<compile_context>
chip_gen: v7x
topology: tpu7x:2x2x1
jax: 0.10.0
libtpu: 0.0.40
codegen_flags: <defaults>
</compile_context>

<pallas_src>
import functools

import jax
import jax.numpy as jnp
from jax import lax
from jax.experimental import pallas as pl
from jax.experimental.pallas import tpu as pltpu

LOW = 200.0
HIGH = 255.0

_TARGET_BLOCK_BYTES = 2 * 1024 * 1024   # ~2 MiB f32 per block => ~8 MiB live
_MIN_GRID = 4                           # aim for >= 4 tiles on large frames


def _round_up(n, m):
    return -(-n // m) * m


def _sat_noise_kernel(seed_ref, x_ref, o_ref, *, low, high, tile_rows, width):
    """x_ref / o_ref: (1, tile_rows, W) blocks of the (1, H, W) image."""
    shape = x_ref.shape

    # Global pixel index of every element in this block.  Keyed on the absolute
    # (row, col) so the injected noise is independent of tiling / TensorCore.
    row0 = pl.program_id(0) * tile_rows
    rows = lax.broadcasted_iota(jnp.int32, shape, 1) + row0
    cols = lax.broadcasted_iota(jnp.int32, shape, 2)
    idx = (rows * width + cols).astype(jnp.uint32)

    # Stateless single-multiply mix of (seed, pixel index) -> 32 random bits.
    seed_mix = seed_ref[0].astype(jnp.uint32) * jnp.uint32(0x9E3779B9)  # scalar
    h = idx ^ seed_mix
    h = h ^ (h >> 16)
    h = h * jnp.uint32(0x7FEB352D)
    h = h ^ (h >> 15)

    # Top 24 bits -> uniform [0, 1) -> [low, high).  Values < 2^24, so routing
    # the float conversion through int32 is exact (and always lowers cleanly).
    u01 = (h >> 8).astype(jnp.int32).astype(jnp.float32) * jnp.float32(1.0 / (1 << 24))
    noise = jnp.float32(low) + jnp.float32(high - low) * u01

    x = x_ref[...].astype(jnp.float32)
    o_ref[...] = jnp.where(x == jnp.float32(255.0), noise, x).astype(o_ref.dtype)


def saturation_noise_inject(x, seed, *, low=LOW, high=HIGH, donate=False):
    """Pallas implementation of SaturationNoiseInjector.forward.

    x: (1, H, W) image with values in [0, 255].  Returns the same shape/dtype
    with saturated (== 255) pixels replaced by uniform noise in [low, high).
    """
    assert x.ndim == 3 and x.shape[0] == 1
    _, H, W = x.shape

    # Row-tile size: multiple of 8 (or the full H), <= ~2 MiB per f32 block,
    # and small enough that large frames get >= ~4 grid steps.
    bytes_per_row = max(W, 1) * 4
    th_vmem = max(8, (_TARGET_BLOCK_BYTES // bytes_per_row) // 8 * 8)
    th_split = max(8, _round_up(-(-H // _MIN_GRID), 8))
    th = min(th_vmem, th_split)
    if th >= H:
        th = H                      # single full-extent block (always legal)
    grid_rows = -(-H // th)         # ragged last block: OOB writes are masked

    seed_arr = jnp.asarray([seed], dtype=jnp.int32)
    kernel = functools.partial(_sat_noise_kernel, low=float(low),
                               high=float(high), tile_rows=th, width=W)

    return pl.pallas_call(
        kernel,
        out_shape=jax.ShapeDtypeStruct((1, H, W), x.dtype),
        grid_spec=pltpu.PrefetchScalarGridSpec(
            num_scalar_prefetch=1,
            grid=(grid_rows,),
            in_specs=[pl.BlockSpec((1, th, W), lambda i, seed_ref: (0, i, 0))],
            out_specs=pl.BlockSpec((1, th, W), lambda i, seed_ref: (0, i, 0)),
        ),
        compiler_params=pltpu.CompilerParams(
            dimension_semantics=("parallel",),
        ),
        input_output_aliases=({1: 0} if donate else {}),
    )(seed_arr, x)


if __name__ == "__main__":
    key = jax.random.PRNGKey(0)
    k1, k2 = jax.random.split(key)

    def make_img(k, H, W):
        img = jnp.floor(jax.random.uniform(k, (1, H, W), minval=0.0, maxval=256.0))
        img = jnp.clip(img, 0.0, 255.0).astype(jnp.float32)
        img = img.at[0, 0, :4].set(255.0)   # guarantee some saturated pixels
        img = img.at[0, 3, 5].set(255.0)
        return img

    ok = True
    # (16, 16): even tiling.  (20, 24): exercises the ragged last row block.
    for k, (H, W) in ((k1, (16, 16)), (k2, (20, 24))):
        img = make_img(k, H, W)
        out = jax.block_until_ready(saturation_noise_inject(img, seed=0))

        sat = img[0] == 255.0
        # Non-saturated pixels unchanged.
        ok &= bool(jnp.all(jnp.where(sat, True, out[0] == img[0])))
        # Saturated pixels replaced by noise in [LOW, HIGH] (<= to tolerate the
        # 2^-24-probability float rounding onto the upper bound).
        ok &= bool(jnp.all(jnp.where(sat, (out[0] >= LOW) & (out[0] <= HIGH), True)))
        ok &= (out.shape == img.shape) and (out.dtype == img.dtype)

    assert ok
    print("KERNEL_OK")
</pallas_src>

<mosaic_0001>
module attributes {stable_mosaic.version = 11 : i64} {
  func.func @_sat_noise_kernel(%arg0: i32, %arg1: memref<1xi32, #tpu.memory_space<smem>>, %arg2: memref<1x8x16xf32, #tpu.memory_space<vmem>>, %arg3: memref<1x8x16xf32, #tpu.memory_space<vmem>>) attributes {dimension_semantics = [#tpu.dimension_semantics<parallel>], iteration_bounds = array<i64: 2>, scalar_prefetch = 1 : i64, scratch_operands = 0 : i64, tpu.core_type = #tpu.core_type<tc>, window_params = [{transform_indices = @transform_0, window_bounds = array<i64: 1, 8, 16>}, {transform_indices = @transform_1, window_bounds = array<i64: 1, 8, 16>}]} {
    %c8_i32 = arith.constant 8 : i32
    %0 = arith.muli %arg0, %c8_i32 : i32
    %1 = tpu.iota {dimensions = array<i32: 1>} : vector<1x8x16xi32>
    %2 = vector.broadcast %0 : i32 to vector<1x8x16xi32>
    %3 = arith.addi %1, %2 : vector<1x8x16xi32>
    %4 = tpu.iota {dimensions = array<i32: 2>} : vector<1x8x16xi32>
    %c16_i32 = arith.constant 16 : i32
    %5 = vector.broadcast %c16_i32 : i32 to vector<1x8x16xi32>
    %6 = arith.muli %3, %5 : vector<1x8x16xi32>
    %7 = arith.addi %6, %4 : vector<1x8x16xi32>
    %c0 = arith.constant 0 : index
    %8 = memref.load %arg1[%c0] : memref<1xi32, #tpu.memory_space<smem>>
    %c-1640531527_i32 = arith.constant -1640531527 : i32
    %9 = arith.muli %8, %c-1640531527_i32 : i32
    %10 = vector.broadcast %9 : i32 to vector<1x8x16xi32>
    %11 = arith.xori %7, %10 : vector<1x8x16xi32>
    %c16_i32_0 = arith.constant 16 : i32
    %12 = vector.broadcast %c16_i32_0 : i32 to vector<1x8x16xi32>
    %13 = arith.shrui %11, %12 : vector<1x8x16xi32>
    %14 = arith.xori %11, %13 : vector<1x8x16xi32>
    %c2146121005_i32 = arith.constant 2146121005 : i32
    %15 = vector.broadcast %c2146121005_i32 : i32 to vector<1x8x16xi32>
    %16 = arith.muli %14, %15 : vector<1x8x16xi32>
    %c15_i32 = arith.constant 15 : i32
    %17 = vector.broadcast %c15_i32 : i32 to vector<1x8x16xi32>
    %18 = arith.shrui %16, %17 : vector<1x8x16xi32>
    %19 = arith.xori %16, %18 : vector<1x8x16xi32>
    %c8_i32_1 = arith.constant 8 : i32
    %20 = vector.broadcast %c8_i32_1 : i32 to vector<1x8x16xi32>
    %21 = arith.shrui %19, %20 : vector<1x8x16xi32>
    %22 = arith.sitofp %21 : vector<1x8x16xi32> to vector<1x8x16xf32>
    %cst = arith.constant 5.96046448E-8 : f32
    %23 = vector.broadcast %cst : f32 to vector<1x8x16xf32>
    %24 = arith.mulf %22, %23 : vector<1x8x16xf32>
    %cst_2 = arith.constant 5.500000e+01 : f32
    %25 = vector.broadcast %cst_2 : f32 to vector<1x8x16xf32>
    %26 = arith.mulf %25, %24 : vector<1x8x16xf32>
    %cst_3 = arith.constant 2.000000e+02 : f32
    %27 = vector.broadcast %cst_3 : f32 to vector<1x8x16xf32>
    %28 = arith.addf %27, %26 : vector<1x8x16xf32>
    %c0_4 = arith.constant 0 : index
    %c0_5 = arith.constant 0 : index
    %c0_6 = arith.constant 0 : index
    %29 = vector.load %arg2[%c0_4, %c0_5, %c0_6] : memref<1x8x16xf32, #tpu.memory_space<vmem>>, vector<1x8x16xf32>
    %cst_7 = arith.constant 2.550000e+02 : f32
    %30 = vector.broadcast %cst_7 : f32 to vector<1x8x16xf32>
    %31 = arith.cmpf oeq, %29, %30 : vector<1x8x16xf32>
    %32 = arith.select %31, %28, %29 : vector<1x8x16xi1>, vector<1x8x16xf32>
    %c0_8 = arith.constant 0 : index
    %c0_9 = arith.constant 0 : index
    %c0_10 = arith.constant 0 : index
    %33 = vector.load %arg3[%c0_8, %c0_9, %c0_10] : memref<1x8x16xf32, #tpu.memory_space<vmem>>, vector<1x8x16xf32>
    tpu.vector_store %arg3[%c0_8, %c0_9, %c0_10], %32 {strides = array<i32>} : memref<1x8x16xf32, #tpu.memory_space<vmem>>, vector<1x8x16xf32>,
    return
  }
  func.func @transform_0(%arg0: i32, %arg1: memref<1xi32, #tpu.memory_space<smem>>) -> (i32, i32, i32) {
    %c0_i32 = arith.constant 0 : i32
    %c0_i32_0 = arith.constant 0 : i32
    %c0_i32_1 = arith.constant 0 : i32
    return %c0_i32, %arg0, %c0_i32_0 : i32, i32, i32
  }
  func.func @transform_1(%arg0: i32, %arg1: memref<1xi32, #tpu.memory_space<smem>>) -> (i32, i32, i32) {
    %c0_i32 = arith.constant 0 : i32
    %c0_i32_0 = arith.constant 0 : i32
    %c0_i32_1 = arith.constant 0 : i32
    return %c0_i32, %arg0, %c0_i32_0 : i32, i32, i32
  }
}

</mosaic_0001>

<llo_original>
// kernel: tpu_custom_call.1
$region0: #{tpu_custom_call.1}
  #allocation0 [shape = 'u32[]', space=smem, size = 0x4, offset = 0x4, fixed_abs, tag = 'smem constant byte address 0x4 - core index']
  #allocation1 [shape = 'u32[144,128]{1,0:T(1,128)}', space=vmem, size = 0x12000, scoped, tag = 'internal scratch']
  #allocation2 [shape = 's32[1]{0}', space=sflag, size = 0x4, scoped, tag = 'scoped memory for tpu_custom_call.1']
  #allocation3 [shape = 's32[1]{0:T(128)S(6)}', space=smem, size = 0x200, scoped, tag = 'prefetched SMEM operand 0']
  %s0 = inlined_call_operand.<no memory space> [shape: s32[1], index: 0, kind: input, shape index: {}]
  %s1 = inlined_call_operand.hbm [shape: f32[1,16,16], index: 1, kind: input, shape index: {}]
  %s2 = inlined_call_operand.hbm [shape: f32[1,16,16], index: 2, kind: output, shape index: {}]
  %s3 = sld [smem:[#allocation0]]
  $region41: #{tpu_custom_call.1} parent=0
    _
  %s5 = ssub.s32 1, %s3
  %s6 = scalar_select 0, %s5, %s3
  %7 = sst [smem:[#allocation3]] %s0
  $region1: #{tpu_custom_call.1} parent=0
    #allocation4 [shape = 'u8[8192]{0}', space=vmem, size = 0x2000, scoped, tag = 'input window, operand 1']
    #allocation5 [shape = 's32[2]{0}', space=sflag, size = 0x8, scoped, tag = 'scoped memory for tpu_custom_call.1']
    #allocation6 [shape = 's32[2]{0}', space=sflag, size = 0x8, scoped, tag = 'scoped memory for tpu_custom_call.1']
    #allocation7 [shape = 'u8[8192]{0}', space=vmem, size = 0x2000, scoped, tag = 'output window, operand 0']
    %8 = vsyncpa [#allocation5], 0
    %s9 = scalar_lea.sflag [#allocation5], 1
    %10 = vsyncpa %s9, 0
    %11 = vsyncpa [#allocation6], 0
    %s12 = scalar_lea.sflag [#allocation6], 1
    %13 = vsyncpa %s12, 0
    loop: start=0, step=1, limit=4
    $region2: #{tpu_custom_call.1} parent=1 // loop_pre_header
      _
    $region3: #{tpu_custom_call.1} parent=1 // loop_header
      %s15 = sphi 0, %s19
      %p16 = scmp.ge.s32.totalorder %s15, 4
      %s25 = sphi 0, %s27
      %s28 = sphi 0, %s25
      %s29 = sphi 0, %s28
      %s45 = sphi 0, %s29
      %s51 = sphi 0, %s53
      %s54 = sphi 0, %s51
      %s55 = sphi 0, %s54
      %s71 = sphi 0, %s55
    $region4: #{tpu_custom_call.1} parent=1 // loop_header_branch
      %18 = sbr.rel (%p16) target = $region8
    $region5: #{tpu_custom_call.1} parent=1 // loop_body
      %s20 = ssub.s32 %s15, 1
      %s21 = ssub.s32 %s15, 2
      %s22 = sadd.s32 %s15, 1
      %s23 = ssub.s32 %s15, %s22
      %p24 = scmp.eq.s32.totalorder %s23, 0
      %s26 = sadd.s32 %s25, 1
      %s27 = scalar_select %p24, %s25, %s26
      %p30 = pneg %p24
      %p31 = scmp.eq.s32.totalorder %s15, 1
      %p32 = por %p30, %p31
      %p33 = scmp.ne.s32.totalorder %s25, %s28
      %p34 = scmp.eq.s32.totalorder %s15, 0
      %p35 = por %p33, %p34
      %p36 = scmp.ne.s32.totalorder %s25, %s28
      %p37 = scmp.eq.s32.totalorder %s20, 1
      %p38 = por %p36, %p37
      %p39 = scmp.ne.s32.totalorder %s28, %s29
      %p40 = scmp.eq.s32.totalorder %s20, 0
      %p41 = por %p39, %p40
      %p42 = scmp.ne.s32.totalorder %s28, %s29
      %p43 = scmp.eq.s32.totalorder %s21, 1
      %p44 = por %p42, %p43
      %p46 = scmp.ne.s32.totalorder %s29, %s45
      %p47 = scmp.eq.s32.totalorder %s21, 0
      %p48 = por %p46, %p47
      %s49 = ssub.s32 %s15, %s22
      %p50 = scmp.eq.s32.totalorder %s49, 0
      %s52 = sadd.s32 %s51, 1
      %s53 = scalar_select %p50, %s51, %s52
      %p56 = pneg %p50
      %p57 = scmp.eq.s32.totalorder %s15, 1
      %p58 = por %p56, %p57
      %p59 = scmp.ne.s32.totalorder %s51, %s54
      %p60 = scmp.eq.s32.totalorder %s15, 0
      %p61 = por %p59, %p60
      %p62 = scmp.ne.s32.totalorder %s51, %s54
      %p63 = scmp.eq.s32.totalorder %s20, 1
      %p64 = por %p62, %p63
      %p65 = scmp.ne.s32.totalorder %s54, %s55
      %p66 = scmp.eq.s32.totalorder %s20, 0
      %p67 = por %p65, %p66
      %p68 = scmp.ne.s32.totalorder %s54, %s55
      %p69 = scmp.eq.s32.totalorder %s21, 1
      %p70 = por %p68, %p69
      %p72 = scmp.ne.s32.totalorder %s55, %s71
      %p73 = scmp.eq.s32.totalorder %s21, 0
      %p74 = por %p72, %p73
      %p75 = scmp.le.s32.totalorder 1, %s15
      %p76 = scmp.lt.s32.totalorder %s15, 3
      %p77 = pnand %p75, %p76
      %p78 = pneg %p77
      // Predicated region
      $region9: #{tpu_custom_call.1} parent=5 // pred_check
        _
      $region10: #{tpu_custom_call.1} parent=5 // pred_check_branch
        %80 = sbr.rel (%p77) target = $region12
      $region11: #{tpu_custom_call.1} parent=5 // pred_region
        %s81 = ssub.s32 %s15, 1
      $region12: #{tpu_custom_call.1} parent=5 // pred_fallthru
        _
      %p82 = scmp.lt.s32.totalorder %s15, 2
      // Predicated region
      $region13: #{tpu_custom_call.1} parent=5 // pred_check
        %p83 = pneg %p82
      $region14: #{tpu_custom_call.1} parent=5 // pred_check_branch
        %85 = sbr.rel (%p83) target = $region16
      $region15: #{tpu_custom_call.1} parent=5 // pred_region
        // Predicated region
        $region17: #{tpu_custom_call.1} parent=15 // pred_check
          %p86 = pneg %p35
        $region18: #{tpu_custom_call.1} parent=15 // pred_check_branch
          %88 = sbr.rel (%p86) target = $region20
        $region19: #{tpu_custom_call.1} parent=15 // pred_region
          %s89 = sand.u32 %s25, 1
          %s90 = scalar_lea.sflag [#allocation5], %s89
          %s91 = sand.u32 %s25, 1
          %s92 = smul.addr %s91, 8
          %s93 = scalar_lea.vmem [#allocation4], %s92
          %s95 = ssub.s32 128, 128
          %96 = vsyncadd %s90, %s95
          %s97 = smul.addr %s15, 128
          %s98 = scalar_lea.hbm %s1, %s97
          %s100 = sshll.u32 %s93, 4
          %s101 = int_to_ptr.vmem [resolvable:$true] %s100
          %103 = dma.hbm_to_vmem [thread:$0]  %s98, 128, %s101, %s90
        $region20: #{tpu_custom_call.1} parent=15 // pred_fallthru
          _
      $region16: #{tpu_custom_call.1} parent=5 // pred_fallthru
        _
      %p104 = scmp.le.s32.totalorder 1, %s15
      %p105 = scmp.lt.s32.totalorder %s15, 3
      %p106 = pnand %p104, %p105
      %p107 = pneg %p106
      // Predicated region
      $region21: #{tpu_custom_call.1} parent=5 // pred_check
        _
      $region22: #{tpu_custom_call.1} parent=5 // pred_check_branch
        %109 = sbr.rel (%p106) target = $region24
      $region23: #{tpu_custom_call.1} parent=5 // pred_region
        %s110 = ssub.s32 %s15, 1
        %s111 = sand.u32 %s28, 1
        %s112 = scalar_lea.sflag [#allocation5], %s111
        %s113 = sand.u32 %s28, 1
        %s114 = smul.addr %s113, 8
        %s115 = scalar_lea.vmem [#allocation4], %s114
        // Predicated region
        $region25: #{tpu_custom_call.1} parent=23 // pred_check
          %p116 = pneg %p41
        $region26: #{tpu_custom_call.1} parent=23 // pred_check_branch
          %118 = sbr.rel (%p116) target = $region28
        $region27: #{tpu_custom_call.1} parent=23 // pred_region
          %119 = dma.done %s112, 128
        $region28: #{tpu_custom_call.1} parent=23 // pred_fallthru
          _
        %s120 = sand.u32 %s28, 1
        %s121 = scalar_lea.sflag [#allocation5], %s120
        %s122 = sand.u32 %s28, 1
        %s123 = smul.addr %s122, 8
        %s124 = scalar_lea.vmem [#allocation4], %s123
        %p125 = pneg %p41
        %p126 = pneg %p38
        %p127 = pneg %p67
        %p128 = pneg %p64
        %s129 = sand.u32 %s54, 1
        %s130 = scalar_lea.sflag [#allocation6], %s129
        %s131 = sand.u32 %s54, 1
        %s132 = smul.addr %s131, 8
        %s133 = scalar_lea.vmem [#allocation7], %s132
        %s134 = smul.u32 %s20, 8
        %v135 = vlaneseq
        %v136 = vshrl.u32 %v135, 7
        %v137 = vstv %s134
        %v138 = vadd.s32 %v136, %v137
        %v139 = vlaneseq
        %v140 = vand.u32 %v139, 127
        %v141 = vmul.u32 %v138, 16
        %v142 = vadd.s32 %v141, %v140
        %s143 = sld [smem:[#allocation3]]
        %s144 = smul.u32 %s143, 2654435769
        %v145 = vstv %s144
        %v146 = vxor.u32 %v142, %v145
        %v147 = vshrl.u32 %v146, 16
        %v148 = vxor.u32 %v146, %v147
        %v149 = vmul.u32 %v148, 2146121005
        %v150 = vshrl.u32 %v149, 15
        %v151 = vxor.u32 %v149, %v150
        %v152 = vshrl.u32 %v151, 8
        %v153 = vcvt.s32.f32 %v152
        %v154 = vmul.f32 %v153, 5.9604645e-08
        %v155 = vmul.f32 %v154, 55.0
        %v156 = vadd.f32 %v155, 200.0
        %v157 = vld [vmem:[%s115] sm:$0xff]
        %vm158 = vcmp.eq.f32.partialorder %v157, 255.0
        %v159 = vsel %vm158, %v156, %v157
        %vm160 = vcmask 130048
        %161 = vst.msk [vmem:[%s133] sm:$0xff] %vm160, %v159
        %s162 = sand.u32 %s54, 1
        %s163 = scalar_lea.sflag [#allocation6], %s162
        %s164 = sand.u32 %s54, 1
        %s165 = smul.addr %s164, 8
        %s166 = scalar_lea.vmem [#allocation7], %s165
        // Predicated region
        $region29: #{tpu_custom_call.1} parent=23 // pred_check
          %p167 = pneg %p64
        $region30: #{tpu_custom_call.1} parent=23 // pred_check_branch
          %169 = sbr.rel (%p167) target = $region32
        $region31: #{tpu_custom_call.1} parent=23 // pred_region
          %s171 = ssub.s32 128, 128
          %172 = vsyncadd %s163, %s171
          %s173 = smul.addr %s20, 128
          %s174 = scalar_lea.hbm %s2, %s173
          %s176 = sshll.u32 %s166, 4
          %s177 = int_to_ptr.vmem [resolvable:$true] %s176
          %179 = dma.vmem_to_hbm [thread:$0]  %s177, 128, %s174, %s163
        $region32: #{tpu_custom_call.1} parent=23 // pred_fallthru
          _
      $region24: #{tpu_custom_call.1} parent=5 // pred_fallthru
        _
      %p180 = scmp.le.s32.totalorder 2, %s15
      // Predicated region
      $region33: #{tpu_custom_call.1} parent=5 // pred_check
        %p181 = pneg %p180
      $region34: #{tpu_custom_call.1} parent=5 // pred_check_branch
        %183 = sbr.rel (%p181) target = $region36
      $region35: #{tpu_custom_call.1} parent=5 // pred_region
        %s184 = ssub.s32 %s15, 2
        // Predicated region
        $region37: #{tpu_custom_call.1} parent=35 // pred_check
          %p185 = pneg %p70
        $region38: #{tpu_custom_call.1} parent=35 // pred_check_branch
          %187 = sbr.rel (%p185) target = $region40
        $region39: #{tpu_custom_call.1} parent=35 // pred_region
          %s188 = sand.u32 %s55, 1
          %s189 = scalar_lea.sflag [#allocation6], %s188
          %s190 = sand.u32 %s55, 1
          %s191 = smul.addr %s190, 8
          %s192 = scalar_lea.vmem [#allocation7], %s191
          %193 = dma.done %s189, 128
        $region40: #{tpu_custom_call.1} parent=35 // pred_fallthru
          _
      $region36: #{tpu_custom_call.1} parent=5 // pred_fallthru
        _
    $region6: #{tpu_custom_call.1} parent=1 // loop_footer
      %s19 = sadd.s32 1, %s15
    $region7: #{tpu_custom_call.1} parent=1 // loop_footer_branch
      %14 = sbr.rel target = $region3
    $region8: #{tpu_custom_call.1} parent=1 // loop_exit
      _
    %194 = vsyncpa [#allocation5], 1
    %s195 = scalar_lea.sflag [#allocation5], 1
    %196 = vsyncpa %s195, 1
    %197 = vsyncpa [#allocation6], 1
    %s198 = scalar_lea.sflag [#allocation6], 1
    %199 = vsyncpa %s198, 1

</llo_original>
